<compile_context>
chip_gen: v5e
topology: v5e:2x2
jax: 0.10.0
libtpu: 0.0.40
codegen_flags: <defaults>
</compile_context>

<pallas_src>
import functools

import jax
import jax.numpy as jnp
import numpy as np
from jax.experimental import pallas as pl
from jax.experimental.pallas import tpu as pltpu


def _nonlocal_kernel(inter, group_size,
                     x_ref, pmat_ref, wproj_ref, wout_ref, bias_ref,
                     o_ref):
    tb, n, c = x_ref.shape
    ns = n // group_size

    x = x_ref[...].astype(jnp.float32)                        # (tb, N, C) residual stays f32
    bias = bias_ref[...]                                      # (1, 3I + C) f32
    b_proj = bias[:, :3 * inter]                              # (1, 3I)  [phi | g | theta]
    b_out = bias[:, 3 * inter:]                               # (1, C)

    # Fused [phi | g | theta] projection: one bf16 MXU pass over all tb*N joint rows,
    # f32 accumulation.
    xf = x.reshape(tb * n, c).astype(jnp.bfloat16)
    proj = jnp.dot(xf, wproj_ref[...],
                   preferred_element_type=jnp.float32) + b_proj          # (tb*N, 3I) f32

    pg3 = proj[:, :2 * inter].reshape(tb, n, 2 * inter).astype(jnp.bfloat16)   # (tb, N, 2I)
    theta3 = proj[:, 2 * inter:].reshape(tb, n, inter).astype(jnp.bfloat16)    # (tb, N, I)

    # Joint grouping + MaxPool1d(group_size): `group_size` static (Ns, N) 0/1 selection
    # matmuls (rows r*Ns..(r+1)*Ns of the constant pmat) feeding an elementwise maximum.
    pooled = None
    for r in range(group_size):                               # static, small (typically 2)
        sel = pmat_ref[r * ns:(r + 1) * ns, :]                # (Ns, N) bf16 0/1
        sel_b = jnp.broadcast_to(sel[None], (tb, ns, n))
        cand = jnp.einsum("bkm,bmi->bki", sel_b, pg3,
                          preferred_element_type=jnp.float32)            # (tb, Ns, 2I)
        pooled = cand if pooled is None else jnp.maximum(pooled, cand)
    pooled = pooled.astype(jnp.bfloat16)
    phi_s = pooled[:, :, :inter]                              # (tb, Ns, I)
    g_s = pooled[:, :, inter:]                                # (tb, Ns, I)

    # Attention: logits, 2-D softmax on (tb*N, Ns), weighted sum of g.
    f = jnp.einsum("bni,bki->bnk", theta3, phi_s,
                   preferred_element_type=jnp.float32)                   # (tb, N, Ns)
    f2 = f.reshape(tb * n, ns)
    f2 = f2 - jnp.max(f2, axis=-1, keepdims=True)
    p = jnp.exp(f2)
    attn = p * pl.reciprocal(jnp.sum(p, axis=-1, keepdims=True), approx=True)
    attn3 = attn.reshape(tb, n, ns).astype(jnp.bfloat16)
    y = jnp.einsum("bnk,bki->bni", attn3, g_s,
                   preferred_element_type=jnp.float32)                   # (tb, N, I)

    # Output projection with eval-mode BN folded into the weight, plus residual (f32).
    wy = jnp.dot(y.reshape(tb * n, inter).astype(jnp.bfloat16), wout_ref[...],
                 preferred_element_type=jnp.float32) + b_out             # (tb*N, C)
    o_ref[...] = (wy.reshape(tb, n, c) + x).astype(o_ref.dtype)


def _pick_batch_tile(B, N, C, inter, group_size,
                     target_rows=2048, vmem_budget_bytes=20 * 1024 * 1024):
    """Largest divisor tb of B such that:
       - grid keeps >= 2 steps when B >= 2 (v7x: both TensorCores busy via 'parallel'),
       - tb*N <= target_rows (big contiguous DMAs, amortize ~0.35us per-step overhead),
       - a conservative per-step VMEM estimate stays well under v7x's 32 MiB scoped default."""
    ns = N // group_size

    def lane_pad(d):
        return -(-d // 128) * 128

    def step_vmem(tb):
        rows = tb * N
        io = 2 * 2 * tb * N * lane_pad(C) * 4                 # x + out blocks, double-buffered
        interm = rows * (lane_pad(3 * inter) + lane_pad(2 * inter) + lane_pad(ns)
                         + lane_pad(inter) + lane_pad(C)) * 4
        return io + interm

    best = 1
    for d in range(1, B + 1):
        if B % d:
            continue
        if B >= 2 and B // d < 2:
            continue
        if d * N > target_rows:
            continue
        if step_vmem(d) > vmem_budget_bytes:
            continue
        best = d
    return best


def graph_nonlocal_pallas(x, params, grouped_order, restored_order, group_size):
    """x: (B, N, C) float32; returns (B, N, C). grouped_order/restored_order are static."""
    B, N, C = x.shape
    inter = params["w_theta"].shape[0]
    assert N % group_size == 0
    ns = N // group_size

    if isinstance(grouped_order, jax.core.Tracer) or isinstance(restored_order, jax.core.Tracer):
        raise TypeError("grouped_order / restored_order must be concrete (static) index arrays")
    go = np.asarray(jax.device_get(grouped_order)).astype(np.int64)
    ro = np.asarray(jax.device_get(restored_order)).astype(np.int64)

    # The row permutation cancels against residual + restore; only the maxpool group
    # membership survives.  perm = go[ro] is the identity whenever restored_order is the
    # inverse of grouped_order (the SemGCN case).
    perm = go[ro]
    if np.array_equal(perm, np.arange(N)):
        x_in = x
        pool_src = go
    else:
        # fallback: one static gather replaces the original two gathers
        x_in = x[:, jnp.asarray(perm, dtype=jnp.int32), :]
        pool_src = np.argsort(perm)[go]

    tb = _pick_batch_tile(B, N, C, inter, group_size)

    # Constant (N, N) 0/1 selection matrix: row r*Ns + k is one-hot at pool_src[k*gs + r]
    # (rows r*Ns..(r+1)*Ns form the group-slot-r selection used in the kernel).
    pmat_np = np.zeros((N, N), dtype=np.float32)
    rk_src = pool_src.reshape(ns, group_size).T.reshape(-1)      # index order (r, k)
    pmat_np[np.arange(N), rk_src] = 1.0
    pmat = jnp.asarray(pmat_np, dtype=jnp.bfloat16)

    # Fused projection weight (column order [phi | g | theta]), eval-BN folded into w_out,
    # packed f32 biases.  Weights pre-cast to bf16 for the MXU fast path.
    eps = 1e-5
    scale = params["bn_gamma"] / jnp.sqrt(params["bn_var"] + eps)             # (C,)
    w_proj = jnp.concatenate(
        [params["w_phi"].T, params["w_g"].T, params["w_theta"].T], axis=1
    ).astype(jnp.bfloat16)                                                    # (C, 3I)
    w_out = (params["w_w"].T * scale[None, :]).astype(jnp.bfloat16)           # (I, C)
    b_out = (params["b_w"] - params["bn_mean"]) * scale + params["bn_beta"]   # (C,)
    bias = jnp.concatenate(
        [params["b_phi"], params["b_g"], params["b_theta"], b_out]
    ).reshape(1, 3 * inter + C).astype(jnp.float32)

    kernel = functools.partial(_nonlocal_kernel, inter, group_size)
    return pl.pallas_call(
        kernel,
        out_shape=jax.ShapeDtypeStruct((B, N, C), x.dtype),
        grid=(B // tb,),
        in_specs=[
            pl.BlockSpec((tb, N, C), lambda i: (i, 0, 0)),          # x (unpermuted / gathered)
            pl.BlockSpec((N, N), lambda i: (0, 0)),                 # grouping selection matrix
            pl.BlockSpec((C, 3 * inter), lambda i: (0, 0)),         # fused phi/g/theta weight
            pl.BlockSpec((inter, C), lambda i: (0, 0)),             # BN-folded output weight
            pl.BlockSpec((1, 3 * inter + C), lambda i: (0, 0)),     # packed biases
        ],
        out_specs=pl.BlockSpec((tb, N, C), lambda i: (i, 0, 0)),
        compiler_params=pltpu.CompilerParams(dimension_semantics=("parallel",)),
    )(x_in, pmat, w_proj, w_out, bias)


def graph_nonlocal_ref(x, p, grouped_order, restored_order, gs):
    """Pure-JAX reference mirroring the PyTorch forward (eval-mode BN), in f32."""
    xg = x[:, grouped_order, :]
    xt = jnp.transpose(xg, (0, 2, 1))                       # (B, C, N)  NCW

    def conv1(w, b, v):
        return jnp.einsum("oi,bin->bon", w, v) + b[None, :, None]

    theta = conv1(p["w_theta"], p["b_theta"], xt)
    phi = conv1(p["w_phi"], p["b_phi"], xt)
    g = conv1(p["w_g"], p["b_g"], xt)
    B, I, N = theta.shape
    ns = N // gs
    phi = jnp.max(phi.reshape(B, I, ns, gs), axis=-1)       # maxpool1d
    g = jnp.max(g.reshape(B, I, ns, gs), axis=-1)

    theta_x = jnp.transpose(theta, (0, 2, 1))               # (B, N, I)
    g_x = jnp.transpose(g, (0, 2, 1))                       # (B, Ns, I)
    f = jnp.einsum("bni,bis->bns", theta_x, phi)
    f = jax.nn.softmax(f, axis=-1)
    y = jnp.einsum("bns,bsi->bni", f, g_x)
    y = jnp.transpose(y, (0, 2, 1))                         # (B, I, N)
    wy = jnp.einsum("oi,bin->bon", p["w_w"], y) + p["b_w"][None, :, None]
    inv = 1.0 / jnp.sqrt(p["bn_var"] + 1e-5)
    wy = ((wy - p["bn_mean"][None, :, None]) * inv[None, :, None]
          * p["bn_gamma"][None, :, None] + p["bn_beta"][None, :, None])
    z = jnp.transpose(wy + xt, (0, 2, 1))
    return z[:, restored_order, :]


if __name__ == "__main__":
    B, N, C = 2, 16, 32          # batch, joints, hid_dim
    group_size = 2
    inter = C // 2               # inter_channels = hid_dim // 2

    key = jax.random.PRNGKey(0)
    ks = jax.random.split(key, 12)

    x = jax.random.normal(ks[0], (B, N, C), dtype=jnp.float32)

    params = {
        "w_theta": 0.1 * jax.random.normal(ks[1], (inter, C), jnp.float32),
        "b_theta": 0.1 * jax.random.normal(ks[2], (inter,), jnp.float32),
        "w_phi":   0.1 * jax.random.normal(ks[3], (inter, C), jnp.float32),
        "b_phi":   0.1 * jax.random.normal(ks[4], (inter,), jnp.float32),
        "w_g":     0.1 * jax.random.normal(ks[5], (inter, C), jnp.float32),
        "b_g":     0.1 * jax.random.normal(ks[6], (inter,), jnp.float32),
        "w_w":     0.1 * jax.random.normal(ks[7], (C, inter), jnp.float32),
        "b_w":     0.1 * jax.random.normal(ks[8], (C,), jnp.float32),
        # BatchNorm1d running stats + affine (eval mode; non-zero so compute is visible)
        "bn_gamma": 1.0 + 0.1 * jax.random.normal(ks[9], (C,), jnp.float32),
        "bn_beta":  0.1 * jax.random.normal(ks[10], (C,), jnp.float32),
        "bn_mean":  0.1 * jax.random.normal(ks[11], (C,), jnp.float32),
        "bn_var":   jnp.ones((C,), jnp.float32) * 0.9,
    }

    # deterministic joint permutation + its inverse (as SemGCN supplies)
    grouped_order_np = np.arange(N).reshape(group_size, N // group_size).T.reshape(-1)
    restored_order_np = np.argsort(grouped_order_np)
    grouped_order = jnp.asarray(grouped_order_np, dtype=jnp.int32)
    restored_order = jnp.asarray(restored_order_np, dtype=jnp.int32)

    # Tolerance reflects bf16 MXU operands + approx reciprocal (f32 accumulation throughout).
    out = graph_nonlocal_pallas(x, params, grouped_order, restored_order, group_size)
    out = jax.block_until_ready(out)
    ref = graph_nonlocal_ref(x, params, grouped_order, restored_order, group_size)
    np.testing.assert_allclose(np.asarray(out), np.asarray(ref), rtol=2e-2, atol=2e-2)

    # Exercise the fallback path: restored_order that is NOT the inverse of grouped_order.
    restored_order2 = np.roll(restored_order_np, 1).astype(np.int32)
    out2 = jax.block_until_ready(
        graph_nonlocal_pallas(x, params, grouped_order_np, restored_order2, group_size))
    ref2 = graph_nonlocal_ref(x, params, grouped_order_np, restored_order2, group_size)
    np.testing.assert_allclose(np.asarray(out2), np.asarray(ref2), rtol=2e-2, atol=2e-2)

    print("KERNEL_OK")
</pallas_src>

<mosaic_0001>
module attributes {stable_mosaic.version = 11 : i64} {
  func.func @_nonlocal_kernel(%arg0: i32, %arg1: memref<1x16x32xf32, #tpu.memory_space<vmem>>, %arg2: memref<16x16xbf16, #tpu.memory_space<vmem>>, %arg3: memref<32x48xbf16, #tpu.memory_space<vmem>>, %arg4: memref<16x32xbf16, #tpu.memory_space<vmem>>, %arg5: memref<1x80xf32, #tpu.memory_space<vmem>>, %arg6: memref<1x16x32xf32, #tpu.memory_space<vmem>>) attributes {dimension_semantics = [#tpu.dimension_semantics<parallel>], iteration_bounds = array<i64: 2>, scalar_prefetch = 0 : i64, scratch_operands = 0 : i64, tpu.core_type = #tpu.core_type<tc>, window_params = [{transform_indices = @transform_0, window_bounds = array<i64: 1, 16, 32>}, {pipeline_mode = #tpu.pipeline_mode<synchronous>, transform_indices = @transform_1, window_bounds = array<i64: 16, 16>}, {pipeline_mode = #tpu.pipeline_mode<synchronous>, transform_indices = @transform_2, window_bounds = array<i64: 32, 48>}, {pipeline_mode = #tpu.pipeline_mode<synchronous>, transform_indices = @transform_3, window_bounds = array<i64: 16, 32>}, {pipeline_mode = #tpu.pipeline_mode<synchronous>, transform_indices = @transform_4, window_bounds = array<i64: 1, 80>}, {transform_indices = @transform_5, window_bounds = array<i64: 1, 16, 32>}]} {
    %c0 = arith.constant 0 : index
    %c0_0 = arith.constant 0 : index
    %c0_1 = arith.constant 0 : index
    %0 = vector.load %arg1[%c0, %c0_0, %c0_1] : memref<1x16x32xf32, #tpu.memory_space<vmem>>, vector<1x16x32xf32>
    %c0_2 = arith.constant 0 : index
    %c0_3 = arith.constant 0 : index
    %1 = vector.load %arg5[%c0_2, %c0_3] : memref<1x80xf32, #tpu.memory_space<vmem>>, vector<1x80xf32>
    %2 = vector.extract_strided_slice %1 {offsets = [0, 0], sizes = [1, 48], strides = [1, 1]} : vector<1x80xf32> to vector<1x48xf32>
    %3 = vector.extract_strided_slice %1 {offsets = [0, 48], sizes = [1, 32], strides = [1, 1]} : vector<1x80xf32> to vector<1x32xf32>
    %4 = vector.shape_cast %0 : vector<1x16x32xf32> to vector<16x32xf32>
    %5 = arith.truncf %4 : vector<16x32xf32> to vector<16x32xbf16>
    %c0_4 = arith.constant 0 : index
    %c0_5 = arith.constant 0 : index
    %6 = vector.load %arg3[%c0_4, %c0_5] : memref<32x48xbf16, #tpu.memory_space<vmem>>, vector<32x48xbf16>
    %cst = arith.constant dense<0.000000e+00> : vector<16x48xf32>
    %7 = tpu.matmul %5, %6, %cst {dimension_numbers = #tpu.dot_dimension_numbers<[1], [0], [0], [1], [0, 0, 1, 1], [], []>} : vector<16x32xbf16>, vector<32x48xbf16>, vector<16x48xf32> -> vector<16x48xf32>
    %8 = vector.broadcast %2 : vector<1x48xf32> to vector<16x48xf32>
    %9 = arith.addf %7, %8 : vector<16x48xf32>
    %10 = vector.extract_strided_slice %9 {offsets = [0, 0], sizes = [16, 32], strides = [1, 1]} : vector<16x48xf32> to vector<16x32xf32>
    %11 = vector.shape_cast %10 : vector<16x32xf32> to vector<1x16x32xf32>
    %12 = arith.truncf %11 : vector<1x16x32xf32> to vector<1x16x32xbf16>
    %13 = vector.extract_strided_slice %9 {offsets = [0, 32], sizes = [16, 16], strides = [1, 1]} : vector<16x48xf32> to vector<16x16xf32>
    %14 = vector.shape_cast %13 : vector<16x16xf32> to vector<1x16x16xf32>
    %15 = arith.truncf %14 : vector<1x16x16xf32> to vector<1x16x16xbf16>
    %c0_6 = arith.constant 0 : index
    %c0_7 = arith.constant 0 : index
    %16 = vector.load %arg2[%c0_6, %c0_7] : memref<16x16xbf16, #tpu.memory_space<vmem>>, vector<8x16xbf16>
    %17 = vector.shape_cast %16 : vector<8x16xbf16> to vector<1x8x16xbf16>
    "tpu.trace_start"() <{level = 10 : i32, message = "bkm,bmi->bki"}> : () -> ()
    %cst_8 = arith.constant dense<0.000000e+00> : vector<1x8x32xf32>
    %18 = tpu.matmul %17, %12, %cst_8 {dimension_numbers = #tpu.dot_dimension_numbers<[2], [1], [1], [2], [0, 0, 0, 1, 1, 2], [0], [0]>} : vector<1x8x16xbf16>, vector<1x16x32xbf16>, vector<1x8x32xf32> -> vector<1x8x32xf32>
    "tpu.trace_stop"() : () -> ()
    %c8 = arith.constant 8 : index
    %c0_9 = arith.constant 0 : index
    %19 = vector.load %arg2[%c8, %c0_9] : memref<16x16xbf16, #tpu.memory_space<vmem>>, vector<8x16xbf16>
    %20 = vector.shape_cast %19 : vector<8x16xbf16> to vector<1x8x16xbf16>
    "tpu.trace_start"() <{level = 10 : i32, message = "bkm,bmi->bki"}> : () -> ()
    %cst_10 = arith.constant dense<0.000000e+00> : vector<1x8x32xf32>
    %21 = tpu.matmul %20, %12, %cst_10 {dimension_numbers = #tpu.dot_dimension_numbers<[2], [1], [1], [2], [0, 0, 0, 1, 1, 2], [0], [0]>} : vector<1x8x16xbf16>, vector<1x16x32xbf16>, vector<1x8x32xf32> -> vector<1x8x32xf32>
    "tpu.trace_stop"() : () -> ()
    %22 = arith.maximumf %18, %21 : vector<1x8x32xf32>
    %23 = arith.truncf %22 : vector<1x8x32xf32> to vector<1x8x32xbf16>
    %24 = vector.extract_strided_slice %23 {offsets = [0, 0, 0], sizes = [1, 8, 16], strides = [1, 1, 1]} : vector<1x8x32xbf16> to vector<1x8x16xbf16>
    %25 = vector.extract_strided_slice %23 {offsets = [0, 0, 16], sizes = [1, 8, 16], strides = [1, 1, 1]} : vector<1x8x32xbf16> to vector<1x8x16xbf16>
    "tpu.trace_start"() <{level = 10 : i32, message = "bni,bki->bnk"}> : () -> ()
    %cst_11 = arith.constant dense<0.000000e+00> : vector<1x16x8xf32>
    %26 = tpu.matmul %15, %24, %cst_11 {dimension_numbers = #tpu.dot_dimension_numbers<[2], [2], [1], [1], [0, 0, 0, 1, 1, 1], [0], [0]>} : vector<1x16x16xbf16>, vector<1x8x16xbf16>, vector<1x16x8xf32> -> vector<1x16x8xf32>
    "tpu.trace_stop"() : () -> ()
    %27 = vector.shape_cast %26 : vector<1x16x8xf32> to vector<16x8xf32>
    %cst_12 = arith.constant dense<0xFF800000> : vector<16xf32>
    %28 = vector.multi_reduction <maximumf>, %27, %cst_12 [1] : vector<16x8xf32> to vector<16xf32>
    %29 = vector.shape_cast %28 : vector<16xf32> to vector<16x1xf32>
    %30 = vector.broadcast %29 : vector<16x1xf32> to vector<16x8xf32>
    %31 = arith.subf %27, %30 : vector<16x8xf32>
    %32 = math.exp %31 : vector<16x8xf32>
    %cst_13 = arith.constant dense<0.000000e+00> : vector<16xf32>
    %33 = vector.multi_reduction <add>, %32, %cst_13 [1] : vector<16x8xf32> to vector<16xf32>
    %34 = vector.shape_cast %33 : vector<16xf32> to vector<16x1xf32>
    %35 = tpu.reciprocal %34 {approx = true} : vector<16x1xf32> -> vector<16x1xf32>
    %36 = vector.broadcast %35 : vector<16x1xf32> to vector<16x8xf32>
    %37 = arith.mulf %32, %36 : vector<16x8xf32>
    %38 = vector.shape_cast %37 : vector<16x8xf32> to vector<1x16x8xf32>
    %39 = arith.truncf %38 : vector<1x16x8xf32> to vector<1x16x8xbf16>
    "tpu.trace_start"() <{level = 10 : i32, message = "bnk,bki->bni"}> : () -> ()
    %cst_14 = arith.constant dense<0.000000e+00> : vector<1x16x16xf32>
    %40 = tpu.matmul %39, %25, %cst_14 {dimension_numbers = #tpu.dot_dimension_numbers<[2], [1], [1], [2], [0, 0, 0, 1, 1, 2], [0], [0]>} : vector<1x16x8xbf16>, vector<1x8x16xbf16>, vector<1x16x16xf32> -> vector<1x16x16xf32>
    "tpu.trace_stop"() : () -> ()
    %41 = vector.shape_cast %40 : vector<1x16x16xf32> to vector<16x16xf32>
    %42 = arith.truncf %41 : vector<16x16xf32> to vector<16x16xbf16>
    %c0_15 = arith.constant 0 : index
    %c0_16 = arith.constant 0 : index
    %43 = vector.load %arg4[%c0_15, %c0_16] : memref<16x32xbf16, #tpu.memory_space<vmem>>, vector<16x32xbf16>
    %cst_17 = arith.constant dense<0.000000e+00> : vector<16x32xf32>
    %44 = tpu.matmul %42, %43, %cst_17 {dimension_numbers = #tpu.dot_dimension_numbers<[1], [0], [0], [1], [0, 0, 1, 1], [], []>} : vector<16x16xbf16>, vector<16x32xbf16>, vector<16x32xf32> -> vector<16x32xf32>
    %45 = vector.broadcast %3 : vector<1x32xf32> to vector<16x32xf32>
    %46 = arith.addf %44, %45 : vector<16x32xf32>
    %47 = vector.shape_cast %46 : vector<16x32xf32> to vector<1x16x32xf32>
    %48 = arith.addf %47, %0 : vector<1x16x32xf32>
    %c0_18 = arith.constant 0 : index
    %c0_19 = arith.constant 0 : index
    %c0_20 = arith.constant 0 : index
    %49 = vector.load %arg6[%c0_18, %c0_19, %c0_20] : memref<1x16x32xf32, #tpu.memory_space<vmem>>, vector<1x16x32xf32>
    tpu.vector_store %arg6[%c0_18, %c0_19, %c0_20], %48 {strides = array<i32>} : memref<1x16x32xf32, #tpu.memory_space<vmem>>, vector<1x16x32xf32>,
    return
  }
  func.func @transform_0(%arg0: i32) -> (i32, i32, i32) {
    %c0_i32 = arith.constant 0 : i32
    %c0_i32_0 = arith.constant 0 : i32
    %c0_i32_1 = arith.constant 0 : i32
    return %arg0, %c0_i32, %c0_i32_0 : i32, i32, i32
  }
  func.func @transform_1(%arg0: i32) -> (i32, i32) {
    %c0_i32 = arith.constant 0 : i32
    %c0_i32_0 = arith.constant 0 : i32
    %c0_i32_1 = arith.constant 0 : i32
    return %c0_i32, %c0_i32_0 : i32, i32
  }
  func.func @transform_2(%arg0: i32) -> (i32, i32) {
    %c0_i32 = arith.constant 0 : i32
    %c0_i32_0 = arith.constant 0 : i32
    %c0_i32_1 = arith.constant 0 : i32
    return %c0_i32, %c0_i32_0 : i32, i32
  }
  func.func @transform_3(%arg0: i32) -> (i32, i32) {
    %c0_i32 = arith.constant 0 : i32
    %c0_i32_0 = arith.constant 0 : i32
    %c0_i32_1 = arith.constant 0 : i32
    return %c0_i32, %c0_i32_0 : i32, i32
  }
  func.func @transform_4(%arg0: i32) -> (i32, i32) {
    %c0_i32 = arith.constant 0 : i32
    %c0_i32_0 = arith.constant 0 : i32
    %c0_i32_1 = arith.constant 0 : i32
    return %c0_i32, %c0_i32_0 : i32, i32
  }
  func.func @transform_5(%arg0: i32) -> (i32, i32, i32) {
    %c0_i32 = arith.constant 0 : i32
    %c0_i32_0 = arith.constant 0 : i32
    %c0_i32_1 = arith.constant 0 : i32
    return %arg0, %c0_i32, %c0_i32_0 : i32, i32, i32
  }
}

</mosaic_0001>

<llo_original>
// kernel: tpu_custom_call.1
$region0: #{tpu_custom_call.1}
  #allocation0 [shape = 'u32[]', space=smem, size = 0x4, offset = 0x4, fixed_abs, tag = 'smem constant byte address 0x4 - core index']
  #allocation1 [shape = 'u32[72,128]{1,0:T(1,128)}', space=vmem, size = 0x9000, scoped, tag = 'internal scratch']
  %s0 = inlined_call_operand.hbm [shape: f32[2,16,32], index: 0, kind: input, shape index: {}]
  %s1 = inlined_call_operand.hbm [shape: bf16[16,16], index: 1, kind: input, shape index: {}]
  %s2 = inlined_call_operand.hbm [shape: bf16[32,48], index: 2, kind: input, shape index: {}]
  %s3 = inlined_call_operand.hbm [shape: bf16[16,32], index: 3, kind: input, shape index: {}]
  %s4 = inlined_call_operand.vmem [shape: f32[1,80], index: 4, kind: input, shape index: {}]
  %s5 = inlined_call_operand.hbm [shape: f32[2,16,32], index: 5, kind: output, shape index: {}]
  %s6 = sld [smem:[#allocation0]]
  $region69: #{tpu_custom_call.1} parent=0
    _
  %s8 = ssub.s32 1, %s6
  %s9 = scalar_select 0, %s8, %s6
  $region1: #{tpu_custom_call.1} parent=0
    #allocation2 [shape = 'u8[16384]{0}', space=vmem, size = 0x4000, scoped, tag = 'input window, operand 0']
    #allocation3 [shape = 's32[2]{0}', space=sflag, size = 0x8, scoped, tag = 'scoped memory for tpu_custom_call.1']
    #allocation4 [shape = 's32[2]{0}', space=sflag, size = 0x8, scoped, tag = 'scoped memory for tpu_custom_call.1']
    #allocation5 [shape = 'u8[4096]{0}', space=vmem, size = 0x1000, scoped, tag = 'input window, operand 1, single buffered']
    #allocation6 [shape = 's32[1]{0}', space=sflag, size = 0x4, scoped, tag = 'scoped memory for tpu_custom_call.1']
    #allocation7 [shape = 'u8[8192]{0}', space=vmem, size = 0x2000, scoped, tag = 'input window, operand 2, single buffered']
    #allocation8 [shape = 'u8[4096]{0}', space=vmem, size = 0x1000, scoped, tag = 'input window, operand 3, single buffered']
    #allocation9 [shape = 's32[1]{0}', space=sflag, size = 0x4, scoped, tag = 'scoped memory for tpu_custom_call.1']
    #allocation10 [shape = 'u8[16384]{0}', space=vmem, size = 0x4000, scoped, tag = 'output window, operand 0']
    %10 = vsyncpa [#allocation3], 0
    %s11 = scalar_lea.sflag [#allocation3], 1
    %12 = vsyncpa %s11, 0
    %13 = vsyncpa [#allocation6], 0
    %14 = vsyncpa [#allocation9], 0
    %15 = vsyncpa [#allocation4], 0
    %s16 = scalar_lea.sflag [#allocation4], 1
    %17 = vsyncpa %s16, 0
    loop: start=0, step=1, limit=4
    $region2: #{tpu_custom_call.1} parent=1 // loop_pre_header
      _
    $region3: #{tpu_custom_call.1} parent=1 // loop_header
      %s19 = sphi 0, %s23
      %p20 = scmp.ge.s32.totalorder %s19, 4
      %s29 = sphi 0, %s31
      %s32 = sphi 0, %s29
      %s33 = sphi 0, %s32
      %s49 = sphi 0, %s33
      %s53 = sphi 0, %s53
      %s55 = sphi 0, %s53
      %s56 = sphi 0, %s55
      %s70 = sphi 0, %s56
      %s74 = sphi 0, %s74
      %s76 = sphi 0, %s74
      %s77 = sphi 0, %s76
      %s91 = sphi 0, %s77
      %s95 = sphi 0, %s95
      %s97 = sphi 0, %s95
      %s98 = sphi 0, %s97
      %s112 = sphi 0, %s98
      %s116 = sphi 0, %s116
      %s118 = sphi 0, %s116
      %s119 = sphi 0, %s118
      %s133 = sphi 0, %s119
      %s139 = sphi 0, %s141
      %s142 = sphi 0, %s139
      %s143 = sphi 0, %s142
      %s159 = sphi 0, %s143
    $region4: #{tpu_custom_call.1} parent=1 // loop_header_branch
      %22 = sbr.rel (%p20) target = $region8
    $region5: #{tpu_custom_call.1} parent=1 // loop_body
      %s24 = ssub.s32 %s19, 1
      %s25 = ssub.s32 %s19, 2
      %s26 = sadd.s32 %s19, 1
      %s27 = ssub.s32 %s19, %s26
      %p28 = scmp.eq.s32.totalorder %s27, 0
      %s30 = sadd.s32 %s29, 1
      %s31 = scalar_select %p28, %s29, %s30
      %p34 = pneg %p28
      %p35 = scmp.eq.s32.totalorder %s19, 1
      %p36 = por %p34, %p35
      %p37 = scmp.ne.s32.totalorder %s29, %s32
      %p38 = scmp.eq.s32.totalorder %s19, 0
      %p39 = por %p37, %p38
      %p40 = scmp.ne.s32.totalorder %s29, %s32
      %p41 = scmp.eq.s32.totalorder %s24, 1
      %p42 = por %p40, %p41
      %p43 = scmp.ne.s32.totalorder %s32, %s33
      %p44 = scmp.eq.s32.totalorder %s24, 0
      %p45 = por %p43, %p44
      %p46 = scmp.ne.s32.totalorder %s32, %s33
      %p47 = scmp.eq.s32.totalorder %s25, 1
      %p48 = por %p46, %p47
      %p50 = scmp.ne.s32.totalorder %s33, %s49
      %p51 = scmp.eq.s32.totalorder %s25, 0
      %p52 = por %p50, %p51
      %s54 = sadd.s32 %s53, 1
      %p57 = scmp.eq.s32.totalorder %s19, 1
      %p58 = scmp.ne.s32.totalorder %s53, %s55
      %p59 = scmp.eq.s32.totalorder %s19, 0
      %p60 = por %p58, %p59
      %p61 = scmp.ne.s32.totalorder %s53, %s55
      %p62 = scmp.eq.s32.totalorder %s24, 1
      %p63 = por %p61, %p62
      %p64 = scmp.ne.s32.totalorder %s55, %s56
      %p65 = scmp.eq.s32.totalorder %s24, 0
      %p66 = por %p64, %p65
      %p67 = scmp.ne.s32.totalorder %s55, %s56
      %p68 = scmp.eq.s32.totalorder %s25, 1
      %p69 = por %p67, %p68
      %p71 = scmp.ne.s32.totalorder %s56, %s70
      %p72 = scmp.eq.s32.totalorder %s25, 0
      %p73 = por %p71, %p72
      %s75 = sadd.s32 %s74, 1
      %p78 = scmp.eq.s32.totalorder %s19, 1
      %p79 = scmp.ne.s32.totalorder %s74, %s76
      %p80 = scmp.eq.s32.totalorder %s19, 0
      %p81 = por %p79, %p80
      %p82 = scmp.ne.s32.totalorder %s74, %s76
      %p83 = scmp.eq.s32.totalorder %s24, 1
      %p84 = por %p82, %p83
      %p85 = scmp.ne.s32.totalorder %s76, %s77
      %p86 = scmp.eq.s32.totalorder %s24, 0
      %p87 = por %p85, %p86
      %p88 = scmp.ne.s32.totalorder %s76, %s77
      %p89 = scmp.eq.s32.totalorder %s25, 1
      %p90 = por %p88, %p89
      %p92 = scmp.ne.s32.totalorder %s77, %s91
      %p93 = scmp.eq.s32.totalorder %s25, 0
      %p94 = por %p92, %p93
      %s96 = sadd.s32 %s95, 1
      %p99 = scmp.eq.s32.totalorder %s19, 1
      %p100 = scmp.ne.s32.totalorder %s95, %s97
      %p101 = scmp.eq.s32.totalorder %s19, 0
      %p102 = por %p100, %p101
      %p103 = scmp.ne.s32.totalorder %s95, %s97
      %p104 = scmp.eq.s32.totalorder %s24, 1
      %p105 = por %p103, %p104
      %p106 = scmp.ne.s32.totalorder %s97, %s98
      %p107 = scmp.eq.s32.totalorder %s24, 0
      %p108 = por %p106, %p107
      %p109 = scmp.ne.s32.totalorder %s97, %s98
      %p110 = scmp.eq.s32.totalorder %s25, 1
      %p111 = por %p109, %p110
      %p113 = scmp.ne.s32.totalorder %s98, %s112
      %p114 = scmp.eq.s32.totalorder %s25, 0
      %p115 = por %p113, %p114
      %s117 = sadd.s32 %s116, 1
      %p120 = scmp.eq.s32.totalorder %s19, 1
      %p121 = scmp.ne.s32.totalorder %s116, %s118
      %p122 = scmp.eq.s32.totalorder %s19, 0
      %p123 = por %p121, %p122
      %p124 = scmp.ne.s32.totalorder %s116, %s118
      %p125 = scmp.eq.s32.totalorder %s24, 1
      %p126 = por %p124, %p125
      %p127 = scmp.ne.s32.totalorder %s118, %s119
      %p128 = scmp.eq.s32.totalorder %s24, 0
      %p129 = por %p127, %p128
      %p130 = scmp.ne.s32.totalorder %s118, %s119
      %p131 = scmp.eq.s32.totalorder %s25, 1
      %p132 = por %p130, %p131
      %p134 = scmp.ne.s32.totalorder %s119, %s133
      %p135 = scmp.eq.s32.totalorder %s25, 0
      %p136 = por %p134, %p135
      %s137 = ssub.s32 %s19, %s26
      %p138 = scmp.eq.s32.totalorder %s137, 0
      %s140 = sadd.s32 %s139, 1
      %s141 = scalar_select %p138, %s139, %s140
      %p144 = pneg %p138
      %p145 = scmp.eq.s32.totalorder %s19, 1
      %p146 = por %p144, %p145
      %p147 = scmp.ne.s32.totalorder %s139, %s142
      %p148 = scmp.eq.s32.totalorder %s19, 0
      %p149 = por %p147, %p148
      %p150 = scmp.ne.s32.totalorder %s139, %s142
      %p151 = scmp.eq.s32.totalorder %s24, 1
      %p152 = por %p150, %p151
      %p153 = scmp.ne.s32.totalorder %s142, %s143
      %p154 = scmp.eq.s32.totalorder %s24, 0
      %p155 = por %p153, %p154
      %p156 = scmp.ne.s32.totalorder %s142, %s143
      %p157 = scmp.eq.s32.totalorder %s25, 1
      %p158 = por %p156, %p157
      %p160 = scmp.ne.s32.totalorder %s143, %s159
      %p161 = scmp.eq.s32.totalorder %s25, 0
      %p162 = por %p160, %p161
      %p163 = scmp.le.s32.totalorder 1, %s19
      %p164 = scmp.lt.s32.totalorder %s19, 3
      %p165 = pnand %p163, %p164
      %p166 = pneg %p165
      // Predicated region
      $region9: #{tpu_custom_call.1} parent=5 // pred_check
        _
      $region10: #{tpu_custom_call.1} parent=5 // pred_check_branch
        %168 = sbr.rel (%p165) target = $region12
      $region11: #{tpu_custom_call.1} parent=5 // pred_region
        %s169 = ssub.s32 %s19, 1
        // Predicated region
        $region13: #{tpu_custom_call.1} parent=11 // pred_check
          %p170 = pneg %p66
        $region14: #{tpu_custom_call.1} parent=11 // pred_check_branch
          %172 = sbr.rel (%p170) target = $region16
        $region15: #{tpu_custom_call.1} parent=11 // pred_region
          %174 = vsyncadd [#allocation6], 0
          %s175 = sshll.u32 %s1, 4
          %s176 = int_to_ptr.hbm [resolvable:$true] %s175
          %s177 = sshll.u32 [#allocation5], 4
          %s178 = int_to_ptr.vmem [resolvable:$true] %s177
          %183 = dma.hbm_to_vmem [thread:$0]  %s176, 128, %s178, [#allocation6], 64, 64, 4
        $region16: #{tpu_custom_call.1} parent=11 // pred_fallthru
          _
        // Predicated region
        $region17: #{tpu_custom_call.1} parent=11 // pred_check
          %p184 = pneg %p87
        $region18: #{tpu_custom_call.1} parent=11 // pred_check_branch
          %186 = sbr.rel (%p184) target = $region20
        $region19: #{tpu_custom_call.1} parent=11 // pred_region
          %188 = vsyncadd [#allocation6], 0
          %s189 = sshll.u32 %s2, 4
          %s190 = int_to_ptr.hbm [resolvable:$true] %s189
          %s191 = sshll.u32 [#allocation7], 4
          %s192 = int_to_ptr.vmem [resolvable:$true] %s191
          %197 = dma.hbm_to_vmem [thread:$0]  %s190, 256, %s192, [#allocation6], 64, 64, 4
        $region20: #{tpu_custom_call.1} parent=11 // pred_fallthru
          _
        // Predicated region
        $region21: #{tpu_custom_call.1} parent=11 // pred_check
          %p198 = pneg %p108
        $region22: #{tpu_custom_call.1} parent=11 // pred_check_branch
          %200 = sbr.rel (%p198) target = $region24
        $region23: #{tpu_custom_call.1} parent=11 // pred_region
          %202 = vsyncadd [#allocation9], 0
          %s203 = sshll.u32 %s3, 4
          %s204 = int_to_ptr.hbm [resolvable:$true] %s203
          %s205 = sshll.u32 [#allocation8], 4
          %s206 = int_to_ptr.vmem [resolvable:$true] %s205
          %211 = dma.hbm_to_vmem [thread:$0]  %s204, 128, %s206, [#allocation9], 64, 64, 4
        $region24: #{tpu_custom_call.1} parent=11 // pred_fallthru
          _
        // Predicated region
        $region25: #{tpu_custom_call.1} parent=11 // pred_check
          %p212 = pneg %p129
        $region26: #{tpu_custom_call.1} parent=11 // pred_check_branch
          %214 = sbr.rel (%p212) target = $region28
        $region27: #{tpu_custom_call.1} parent=11 // pred_region
          _
        $region28: #{tpu_custom_call.1} parent=11 // pred_fallthru
          _
      $region12: #{tpu_custom_call.1} parent=5 // pred_fallthru
        _
      %p215 = scmp.lt.s32.totalorder %s19, 2
      // Predicated region
      $region29: #{tpu_custom_call.1} parent=5 // pred_check
        %p216 = pneg %p215
      $region30: #{tpu_custom_call.1} parent=5 // pred_check_branch
        %218 = sbr.rel (%p216) target = $region32
      $region31: #{tpu_custom_call.1} parent=5 // pred_region
        // Predicated region
        $region33: #{tpu_custom_call.1} parent=31 // pred_check
          %p219 = pneg %p39
        $region34: #{tpu_custom_call.1} parent=31 // pred_check_branch
          %221 = sbr.rel (%p219) target = $region36
        $region35: #{tpu_custom_call.1} parent=31 // pred_region
          %s222 = sand.u32 %s29, 1
          %s223 = scalar_lea.sflag [#allocation3], %s222
          %s224 = sand.u32 %s29, 1
          %s225 = smul.addr %s224, 16
          %s226 = scalar_lea.vmem [#allocation2], %s225
          %228 = vsyncadd %s223, 0
          %s229 = smul.addr %s19, 2
          %s230 = smul.addr %s229, 8
          %s231 = scalar_lea.hbm %s0, %s230
          %s232 = sshll.u32 %s231, 4
          %s233 = int_to_ptr.hbm [resolvable:$true] %s232
          %s234 = sshll.u32 %s226, 4
          %s235 = int_to_ptr.vmem [resolvable:$true] %s234
          %240 = dma.hbm_to_vmem [thread:$0]  %s233, 256, %s235, %s223, 128, 128, 8
        $region36: #{tpu_custom_call.1} parent=31 // pred_fallthru
          _
      $region32: #{tpu_custom_call.1} parent=5 // pred_fallthru
        _
      %p241 = scmp.le.s32.totalorder 1, %s19
      %p242 = scmp.lt.s32.totalorder %s19, 3
      %p243 = pnand %p241, %p242
      %p244 = pneg %p243
      // Predicated region
      $region37: #{tpu_custom_call.1} parent=5 // pred_check
        _
      $region38: #{tpu_custom_call.1} parent=5 // pred_check_branch
        %246 = sbr.rel (%p243) target = $region40
      $region39: #{tpu_custom_call.1} parent=5 // pred_region
        %s247 = ssub.s32 %s19, 1
        %s248 = sand.u32 %s32, 1
        %s249 = scalar_lea.sflag [#allocation3], %s248
        %s250 = sand.u32 %s32, 1
        %s251 = smul.addr %s250, 16
        %s252 = scalar_lea.vmem [#allocation2], %s251
        // Predicated region
        $region41: #{tpu_custom_call.1} parent=39 // pred_check
          %p253 = pneg %p45
        $region42: #{tpu_custom_call.1} parent=39 // pred_check_branch
          %255 = sbr.rel (%p253) target = $region44
        $region43: #{tpu_custom_call.1} parent=39 // pred_region
          %257 = dma.done %s249, 256
        $region44: #{tpu_custom_call.1} parent=39 // pred_fallthru
          _
        // Predicated region
        $region45: #{tpu_custom_call.1} parent=39 // pred_check
          %p258 = pneg %p66
        $region46: #{tpu_custom_call.1} parent=39 // pred_check_branch
          %260 = sbr.rel (%p258) target = $region48
        $region47: #{tpu_custom_call.1} parent=39 // pred_region
          %262 = dma.done [#allocation6], 128
        $region48: #{tpu_custom_call.1} parent=39 // pred_fallthru
          _
        // Predicated region
        $region49: #{tpu_custom_call.1} parent=39 // pred_check
          %p263 = pneg %p87
        $region50: #{tpu_custom_call.1} parent=39 // pred_check_branch
          %265 = sbr.rel (%p263) target = $region52
        $region51: #{tpu_custom_call.1} parent=39 // pred_region
          %267 = dma.done [#allocation6], 256
        $region52: #{tpu_custom_call.1} parent=39 // pred_fallthru
          _
        // Predicated region
        $region53: #{tpu_custom_call.1} parent=39 // pred_check
          %p268 = pneg %p108
        $region54: #{tpu_custom_call.1} parent=39 // pred_check_branch
          %270 = sbr.rel (%p268) target = $region56
        $region55: #{tpu_custom_call.1} parent=39 // pred_region
          %272 = dma.done [#allocation9], 128
        $region56: #{tpu_custom_call.1} parent=39 // pred_fallthru
          _
        %s273 = sand.u32 %s32, 1
        %s274 = scalar_lea.sflag [#allocation3], %s273
        %s275 = sand.u32 %s32, 1
        %s276 = smul.addr %s275, 16
        %s277 = scalar_lea.vmem [#allocation2], %s276
        %p278 = pneg %p45
        %p279 = pneg %p42
        %p280 = pneg %p66
        %p281 = pneg %p63
        %p282 = pneg %p87
        %p283 = pneg %p84
        %p284 = pneg %p108
        %p285 = pneg %p105
        %p286 = pneg %p129
        %p287 = pneg %p126
        %p288 = pneg %p155
        %p289 = pneg %p152
        %s290 = sand.u32 %s142, 1
        %s291 = scalar_lea.sflag [#allocation4], %s290
        %s292 = sand.u32 %s142, 1
        %s293 = smul.addr %s292, 16
        %s294 = scalar_lea.vmem [#allocation10], %s293
        %v296 = vld [vmem:[%s252] sm:$0xff]
        %v297 = vld [vmem:[%s252 + $0x8] sm:$0xff]
        %v298 = vld [vmem:[%s4] sm:$0x1]
        %v299 = vpack.c.bf16 %v297, %v296
        %v300 = vld [vmem:[#allocation7] sm:$0xf]
        %v301 = vld [vmem:[#allocation7 + $0x4] sm:$0xf]
        %v302 = vld [vmem:[#allocation7 + $0x8] sm:$0xf]
        %v303 = vld [vmem:[#allocation7 + $0xc] sm:$0xf]
        %v305 = vperm.slane %v298, 0
        %v311 = vunpack.c.l.b16 %v300
        %v312 = vunpack.c.l.b16 %v301
        %v313 = vunpack.c.l.b16 %v302
        %v314 = vunpack.c.l.b16 %v303
        %v315 = vpack.c.b16 %v312, %v311
        %v316 = vpack.c.b16 %v314, %v313
        %vm319 = vcmask 261120
        %v321 = vsel %vm319, %v299, 0
        %323 = vmatpush.bf16.msra.mxu0 0
        %324 = vmatpush.bf16.msra.mxu0 0
        %325 = vmatpush.bf16.msra.mxu0 0
        %326 = vmatpush.bf16.msra.mxu0 0
        %327 = vmatpush.bf16.msra.mxu0 0
        %328 = vmatpush.bf16.msra.mxu0 0
        %329 = vmatpush.bf16.msra.mxu0 %v316
        %330 = vmatpush.bf16.msra.mxu0 %v315
        %331 = vmatmul.bf16.gmra.mxu0 %v321
        %v332 = vpop.f32.mrf.mxu0
        %v333 = vadd.f32 %v305, %v332
        %v334 = vpop.f32.mrf.mxu0
        %v335 = vadd.f32 %v305, %v334
        %336 = vdwg.mxu0
        %v337 = vpack.c.bf16 %v333, %v333
        %v338 = vpack.c.bf16 %v335, %v335
        %v339 = vld [vmem:[#allocation5] sm:$0xf]
        %v342 = vunpack.c.l.b16 %v337
        %v343 = vunpack.c.l.b16 %v338
        %v344 = vpack.c.b16 %v343, %v342
        %vm346 = vcmask 130048
        %v348 = vsel %vm346, %v339, 0
        %350 = vmatpush.bf16.msra.mxu0 0
        %351 = vmatpush.bf16.msra.mxu0 0
        %352 = vmatpush.bf16.msra.mxu0 0
        %353 = vmatpush.bf16.msra.mxu0 0
        %354 = vmatpush.bf16.msra.mxu0 0
        %355 = vmatpush.bf16.msra.mxu0 0
        %356 = vmatpush.bf16.msra.mxu0 0
        %357 = vmatpush.bf16.msra.mxu0 %v344
        %358 = vmatmul.bf16.gmra.mxu0 %v348
        %v359 = vpop.f32.mrf.mxu0
        %v360 = vadd.f32 0.0, %v359
        %v361 = vpop.f32.mrf.mxu0
        %362 = vdwg.mxu0
        %v363 = vld [vmem:[#allocation5 + $0x4] sm:$0xf]
        %v365 = vsel %vm346, %v363, 0
        %367 = vmatpush.bf16.msra.mxu0 0
        %368 = vmatpush.bf16.msra.mxu0 0
        %369 = vmatpush.bf16.msra.mxu0 0
        %370 = vmatpush.bf16.msra.mxu0 0
        %371 = vmatpush.bf16.msra.mxu0 0
        %372 = vmatpush.bf16.msra.mxu0 0
        %373 = vmatpush.bf16.msra.mxu0 0
        %374 = vmatpush.bf16.msra.mxu0 %v344
        %375 = vmatmul.bf16.gmra.mxu0 %v365
        %v376 = vpop.f32.mrf.mxu0
        %v377 = vadd.f32 0.0, %v376
        %v378 = vpop.f32.mrf.mxu0
        %379 = vdwg.mxu0
        %v380 = vmax.f32 %v360, %v377
        %v381 = vpack.c.bf16 %v380, %v380
        %382 = vrot.lane.b32.xlu0 %v344, 96
        %v383 = vpop.permute.xlu0 %382
        %v385 = vsel %vm346, %v383, 0
        %v388 = vsel %vm346, %v381, 0
        %390 = vmatpush.bf16.xpose.msra.mxu0 0
        %391 = vmatpush.bf16.xpose.msra.mxu0 0
        %392 = vmatpush.bf16.xpose.msra.mxu0 0
        %393 = vmatpush.bf16.xpose.msra.mxu0 0
        %394 = vmatpush.bf16.xpose.msra.mxu0 0
        %395 = vmatpush.bf16.xpose.msra.mxu0 0
        %396 = vmatpush.bf16.xpose.msra.mxu0 0
        %397 = vmatpush.bf16.xpose.msra.mxu0 %v388
        %398 = vmatmul.bf16.gmra.mxu0 %v385
        %v399 = vpop.f32.mrf.mxu0
        %v400 = vadd.f32 0.0, %v399
        %v401 = vpop.f32.mrf.mxu0
        %v402 = vadd.f32 0.0, %v401
        %403 = vdwg.mxu0
        %vm404 = vcmask 64512
        %v405 = vsel %vm404, %v400, -inf
        %406 = vmax.xlane.f32.xlu0 %v405
        %v407 = vpop.xlane.xlu0 %406
        %v408 = vsel %vm404, %v402, -inf
        %409 = vmax.xlane.f32.xlu0 %v408
        %v410 = vpop.xlane.xlu0 %409
        %v411 = vsub.f32 %v400, %v407
        %v412 = vsub.f32 %v402, %v410
        %v413 = vmul.f32 %v411, 1.442695
        %v414 = vpow.pop %v413
        %v415 = vmul.f32 %v412, 1.442695
        %v416 = vpow.pop %v415
        %v417 = vsel %vm404, %v414, 0.0
        %418 = vadd.xlane.f32.xlu0 %v417
        %v419 = vpop.xlane.xlu0 %418
        %v420 = vsel %vm404, %v416, 0.0
        %421 = vadd.xlane.f32.xlu0 %v420
        %v422 = vpop.xlane.xlu0 %421
        %v423 = vrcp.pop %v419
        %v424 = vrcp.pop %v422
        %v425 = vmul.f32 %v414, %v423
        %v426 = vmul.f32 %v416, %v424
        %v427 = vpack.c.bf16 %v425, %v425
        %v428 = vpack.c.bf16 %v426, %v426
        %v431 = vunpack.c.l.b16 %v427
        %v432 = vunpack.c.l.b16 %v428
        %v433 = vpack.c.b16 %v432, %v431
        %v435 = vunpack.c.l.b16 %v381
        %v436 = vpack.c.b16 %v435, %v435
        %437 = vrot.lane.b32.xlu0 %v436, 112
        %v438 = vpop.permute.xlu0 %437
        %v440 = vsel %vm404, %v433, 0
        %vm442 = vcmask 1043456
        %v444 = vsel %vm442, %v438, 0
        %446 = vmatpush.bf16.msra.mxu0 0
        %447 = vmatpush.bf16.msra.mxu0 0
        %448 = vmatpush.bf16.msra.mxu0 0
        %449 = vmatpush.bf16.msra.mxu0 0
        %450 = vmatpush.bf16.msra.mxu0 0
        %451 = vmatpush.bf16.msra.mxu0 0
        %452 = vmatpush.bf16.msra.mxu0 0
        %453 = vmatpush.bf16.msra.mxu0 %v444
        %454 = vmatmul.bf16.gmra.mxu0 %v440
        %v455 = vpop.f32.mrf.mxu0
        %v456 = vadd.f32 0.0, %v455
        %v457 = vpop.f32.mrf.mxu0
        %v458 = vadd.f32 0.0, %v457
        %459 = vdwg.mxu0
        %v460 = vpack.c.bf16 %v458, %v456
        %v461 = vld [vmem:[#allocation8] sm:$0xf]
        %v462 = vld [vmem:[#allocation8 + $0x4] sm:$0xf]
        %v465 = vunpack.c.l.b16 %v461
        %v466 = vunpack.c.l.b16 %v462
        %v467 = vpack.c.b16 %v466, %v465
        %469 = vrot.lane.b32.xlu0 %v305, 80
        %v470 = vpop.permute.xlu0 %469
        %v473 = vsel %vm346, %v460, 0
        %475 = vmatpush.bf16.msra.mxu0 0
        %476 = vmatpush.bf16.msra.mxu0 0
        %477 = vmatpush.bf16.msra.mxu0 0
        %478 = vmatpush.bf16.msra.mxu0 0
        %479 = vmatpush.bf16.msra.mxu0 0
        %480 = vmatpush.bf16.msra.mxu0 0
        %481 = vmatpush.bf16.msra.mxu0 0
        %482 = vmatpush.bf16.msra.mxu0 %v467
        %483 = vmatmul.bf16.gmra.mxu0 %v473
        %v484 = vpop.f32.mrf.mxu0
        %v485 = vadd.f32 %v470, %v484
        %v486 = vpop.f32.mrf.mxu0
        %v487 = vadd.f32 %v470, %v486
        %488 = vdwg.mxu0
        %v489 = vadd.f32 %v485, %v296
        %v490 = vadd.f32 %v487, %v297
        %491 = vst.msk [vmem:[%s294] sm:$0xff] %vm319, %v489
        %492 = vst.msk [vmem:[%s294 + $0x8] sm:$0xff] %vm319, %v490
        %s493 = sand.u32 %s142, 1
        %s494 = scalar_lea.sflag [#allocation4], %s493
        %s495 = sand.u32 %s142, 1
        %s496 = smul.addr %s495, 16
        %s497 = scalar_lea.vmem [#allocation10], %s496
        // Predicated region
        $region57: #{tpu_custom_call.1} parent=39 // pred_check
          %p498 = pneg %p152
        $region58: #{tpu_custom_call.1} parent=39 // pred_check_branch
          %500 = sbr.rel (%p498) target = $region60
        $region59: #{tpu_custom_call.1} parent=39 // pred_region
          %502 = vsyncadd %s494, 0
          %s503 = smul.addr %s24, 2
          %s504 = smul.addr %s503, 8
          %s505 = scalar_lea.hbm %s5, %s504
          %s506 = sshll.u32 %s497, 4
          %s507 = int_to_ptr.vmem [resolvable:$true] %s506
          %s508 = sshll.u32 %s505, 4
          %s509 = int_to_ptr.hbm [resolvable:$true] %s508
          %514 = dma.vmem_to_hbm [thread:$0]  %s507, 256, %s509, %s494, 128, 128, 8
        $region60: #{tpu_custom_call.1} parent=39 // pred_fallthru
          _
      $region40: #{tpu_custom_call.1} parent=5 // pred_fallthru
        _
      %p515 = scmp.le.s32.totalorder 2, %s19
      // Predicated region
      $region61: #{tpu_custom_call.1} parent=5 // pred_check
        %p516 = pneg %p515
      $region62: #{tpu_custom_call.1} parent=5 // pred_check_branch
        %518 = sbr.rel (%p516) target = $region64
      $region63: #{tpu_custom_call.1} parent=5 // pred_region
        %s519 = ssub.s32 %s19, 2
        // Predicated region
        $region65: #{tpu_custom_call.1} parent=63 // pred_check
          %p520 = pneg %p158
        $region66: #{tpu_custom_call.1} parent=63 // pred_check_branch
          %522 = sbr.rel (%p520) target = $region68
        $region67: #{tpu_custom_call.1} parent=63 // pred_region
          %s523 = sand.u32 %s143, 1
          %s524 = scalar_lea.sflag [#allocation4], %s523
          %s525 = sand.u32 %s143, 1
          %s526 = smul.addr %s525, 16
          %s527 = scalar_lea.vmem [#allocation10], %s526
          %529 = dma.done %s524, 256
        $region68: #{tpu_custom_call.1} parent=63 // pred_fallthru
          _
      $region64: #{tpu_custom_call.1} parent=5 // pred_fallthru
        _
    $region6: #{tpu_custom_call.1} parent=1 // loop_footer
      %s23 = sadd.s32 1, %s19
    $region7: #{tpu_custom_call.1} parent=1 // loop_footer_branch
      %18 = sbr.rel target = $region3
    $region8: #{tpu_custom_call.1} parent=1 // loop_exit
      _
    %530 = vsyncpa [#allocation3], 1
    %s531 = scalar_lea.sflag [#allocation3], 1
    %532 = vsyncpa %s531, 1
    %533 = vsyncpa [#allocation6], 1
    %534 = vsyncpa [#allocation9], 1
    %535 = vsyncpa [#allocation4], 1
    %s536 = scalar_lea.sflag [#allocation4], 1
    %537 = vsyncpa %s536, 1

</llo_original>
